<compile_context>
chip_gen: v7x
topology: tpu7x:2x2x1
jax: 0.10.0
libtpu: 0.0.40
codegen_flags: <defaults>
</compile_context>

<pallas_src>
import functools

import jax
import jax.numpy as jnp
from jax.experimental import pallas as pl
from jax.experimental.pallas import tpu as pltpu

EPS = 1e-5
VMEM_LIMIT = 32 * 1024 * 1024


# ----------------------------------------------------------------------------
# Kernel 1: ConvTranspose3x3(s=2,p=1,op=1) sub-pixel decomposed + 1x1 stride-2 upsample
# projection, fused into ONE (H*W, 4*Cin) @ (4*Cin, 4*Co + Co) matmul, with BN partial sums.
# Output y is phase-packed: y[b, a, j, (2*qy+qx)*Co + c] = conv1(x)[b, 2a+qy, 2j+qx, c].
# ----------------------------------------------------------------------------
def _tconv_up_kernel(H, W, Cin, Co, x_ref, w_ref, y_ref, u_ref, st_ref):
    HW = H * W
    xv = x_ref[0]                                              # (H, W, Cin) bf16
    zc = jnp.zeros((H, 1, Cin), xv.dtype)
    zr = jnp.zeros((1, W + 1, Cin), xv.dtype)
    xe = jnp.concatenate([jnp.concatenate([xv, zc], axis=1), zr], axis=0)   # in-kernel halo

    def tap(dy, dx):
        return xe[dy:dy + H, dx:dx + W, :].reshape(HW, Cin)

    xcat = jnp.concatenate([tap(0, 0), tap(0, 1), tap(1, 0), tap(1, 1)], axis=1)  # (HW, 4*Cin)
    res = jnp.dot(xcat, w_ref[...], preferred_element_type=jnp.float32)           # (HW, 5*Co)

    y_ref[0] = res[:, :4 * Co].reshape(H, W, 4 * Co).astype(y_ref.dtype)  # full 128-lane store
    u_ref[0] = res[:, 4 * Co:].reshape(H, W, Co).astype(u_ref.dtype)
    srow = jnp.sum(res, axis=0, keepdims=True)
    qrow = jnp.sum(res * res, axis=0, keepdims=True)
    st_ref[0] = jnp.concatenate([srow, qrow], axis=0)          # (2, 5*Co) per-batch partials


def tconv_upsample(x, w1pack, Co):
    """x: (B, H, W, Cin) bf16; w1pack: (4*Cin, 4*Co + Co) bf16 (prepacked)."""
    B, H, W, Cin = x.shape
    kern = functools.partial(_tconv_up_kernel, H, W, Cin, Co)
    # TODO(synk): add a row-block grid axis (like bn_relu_conv2) once H*W*Cin stops fitting VMEM.
    return pl.pallas_call(
        kern,
        grid=(B,),
        in_specs=[pl.BlockSpec((1, H, W, Cin), lambda b: (b, 0, 0, 0)),
                  pl.BlockSpec((4 * Cin, 5 * Co), lambda b: (0, 0))],
        out_specs=(pl.BlockSpec((1, H, W, 4 * Co), lambda b: (b, 0, 0, 0)),
                   pl.BlockSpec((1, H, W, Co), lambda b: (b, 0, 0, 0)),
                   pl.BlockSpec((1, 2, 5 * Co), lambda b: (b, 0, 0))),
        out_shape=(jax.ShapeDtypeStruct((B, H, W, 4 * Co), jnp.bfloat16),
                   jax.ShapeDtypeStruct((B, H, W, Co), jnp.bfloat16),
                   jax.ShapeDtypeStruct((B, 2, 5 * Co), jnp.float32)),
        compiler_params=pltpu.CompilerParams(
            dimension_semantics=("parallel",), vmem_limit_bytes=VMEM_LIMIT),
    )(x, w1pack)


# ----------------------------------------------------------------------------
# Kernel 2: fused BN1-apply + ReLU + Conv3x3(s=1,p=1) (expressed as a 3x3 conv over the
# phase-packed (H, W, 4*Co) image) + BN2 partial sums.  Grid (B, H//RB), row-blocked; the
# BN1-activated halo-padded image is built once per batch into a persistent VMEM scratch.
# ----------------------------------------------------------------------------
def _bn_relu_conv2_kernel(H, W, Co, RB, y1_ref, s1_ref, b1_ref, w2_ref,
                          y2_ref, st_ref, apad_ref):
    C = 4 * Co
    r = pl.program_id(1)

    @pl.when(r == 0)                                           # once per batch image
    def _():
        a = y1_ref[0].astype(jnp.float32) * s1_ref[...].reshape(1, 1, C) \
            + b1_ref[...].reshape(1, 1, C)
        a = jnp.maximum(a, 0.0).astype(apad_ref.dtype)         # (H, W, C)
        zc = jnp.zeros((H, 1, C), a.dtype)
        a = jnp.concatenate([zc, a, zc], axis=1)               # (H, W+2, C)
        zr = jnp.zeros((1, W + 2, C), a.dtype)
        apad_ref[...] = jnp.concatenate([zr, a, zr], axis=0)   # zero halo, full aligned store
        st_ref[...] = jnp.zeros_like(st_ref)

    roff = pl.multiple_of(r * RB, RB)
    win = apad_ref[pl.ds(roff, RB + 2), :, :]                  # (RB+2, W+2, C) bf16
    cols = [win[da:da + RB, db:db + W, :].reshape(RB * W, C)
            for da in range(3) for db in range(3)]
    xcat = jnp.concatenate(cols, axis=1)                       # im2col in VMEM: (RB*W, 9*C)
    res = jnp.dot(xcat, w2_ref[...], preferred_element_type=jnp.float32)   # (RB*W, C)

    y2_ref[0] = res.reshape(RB, W, C).astype(y2_ref.dtype)     # full 128-lane store
    srow = jnp.sum(res, axis=0, keepdims=True)
    qrow = jnp.sum(res * res, axis=0, keepdims=True)
    st_ref[0] = st_ref[0] + jnp.concatenate([srow, qrow], axis=0)


def bn_relu_conv2(y1, scale1_t, shift1_t, w2cat, Co):
    """y1: (B, H, W, 4*Co) bf16 phase-packed; w2cat: (9*4*Co, 4*Co) bf16 (prepacked)."""
    B, H, W, C = y1.shape
    RB = 8 if H % 8 == 0 else H
    kern = functools.partial(_bn_relu_conv2_kernel, H, W, Co, RB)
    return pl.pallas_call(
        kern,
        grid=(B, H // RB),
        in_specs=[pl.BlockSpec((1, H, W, C), lambda b, r: (b, 0, 0, 0)),
                  pl.BlockSpec((1, C), lambda b, r: (0, 0)),
                  pl.BlockSpec((1, C), lambda b, r: (0, 0)),
                  pl.BlockSpec((9 * C, C), lambda b, r: (0, 0))],
        out_specs=(pl.BlockSpec((1, RB, W, C), lambda b, r: (b, r, 0, 0)),
                   pl.BlockSpec((1, 2, C), lambda b, r: (b, 0, 0))),
        out_shape=(jax.ShapeDtypeStruct((B, H, W, C), jnp.bfloat16),
                   jax.ShapeDtypeStruct((B, 2, C), jnp.float32)),
        scratch_shapes=[pltpu.VMEM((H + 2, W + 2, C), jnp.bfloat16)],
        compiler_params=pltpu.CompilerParams(
            dimension_semantics=("parallel", "arbitrary"),
            vmem_limit_bytes=VMEM_LIMIT),
    )(y1, scale1_t, shift1_t, w2cat)


# ----------------------------------------------------------------------------
# Kernel 3: residual epilogue on the phase-packed layout:
#   out = relu(bn2(conv2) + bn_up(upsample(x)))
# The stride-2 1x1 upsample only populates phase block 0; both BN shifts are folded into `bias`.
# Lane-dense (128-channel) blocks, gridded over rows.
# ----------------------------------------------------------------------------
def _epilogue_kernel(Co, y_ref, u_ref, s2_ref, bias_ref, su_ref, o_ref):
    v = y_ref[...].astype(jnp.float32) * s2_ref[...] + bias_ref[...]
    uv = u_ref[...].astype(jnp.float32) * su_ref[...]
    v = v + jnp.concatenate(
        [uv, jnp.zeros((uv.shape[0], 3 * Co), jnp.float32)], axis=1)
    o_ref[...] = jnp.maximum(v, 0.0)


def residual_bn_relu(y2_2d, u_2d, scale2_t, bias_t, scale_u, Co, tm=256):
    M, C = y2_2d.shape
    tm = min(tm, M)
    Mp = pl.cdiv(M, tm) * tm
    if Mp != M:
        y2_2d = jnp.pad(y2_2d, ((0, Mp - M), (0, 0)))
        u_2d = jnp.pad(u_2d, ((0, Mp - M), (0, 0)))
    out = pl.pallas_call(
        functools.partial(_epilogue_kernel, Co),
        grid=(Mp // tm,),
        in_specs=[pl.BlockSpec((tm, C), lambda i: (i, 0)),
                  pl.BlockSpec((tm, Co), lambda i: (i, 0)),
                  pl.BlockSpec((1, C), lambda i: (0, 0)),
                  pl.BlockSpec((1, C), lambda i: (0, 0)),
                  pl.BlockSpec((1, Co), lambda i: (0, 0))],
        out_specs=pl.BlockSpec((tm, C), lambda i: (i, 0)),
        out_shape=jax.ShapeDtypeStruct((Mp, C), jnp.float32),
        compiler_params=pltpu.CompilerParams(dimension_semantics=("parallel",)),
    )(y2_2d, u_2d, scale2_t, bias_t, scale_u)
    return out[:M]


# ----------------------------------------------------------------------------
# Glue
# ----------------------------------------------------------------------------
def _bn_scale_shift(ch_sum, ch_sumsq, count):
    """Train-mode BatchNorm2d (gamma=1, beta=0) scale/shift from fused partial sums."""
    mean = ch_sum / count
    var = jnp.maximum(ch_sumsq / count - mean * mean, 0.0)
    scale = jax.lax.rsqrt(var + EPS)
    return scale, -mean * scale


@jax.jit
def transpose_basic_block_forward(x_nchw, params):
    """TransposeBasicBlock(inplanes, planes, stride=2, upsample=ConvT1x1(s=2,op=1)+BN).
    NCHW in / NCHW out; compute in NHWC phase-packed layout; dropout_rate=0 -> no dropout."""
    w1pack, w2cat = params['w1pack'], params['w2cat']
    B, _, H, W = x_nchw.shape
    Co = w1pack.shape[1] // 5
    n_bn = B * (2 * H) * (2 * W)                               # BN population per channel

    x = jnp.transpose(x_nchw, (0, 2, 3, 1)).astype(jnp.bfloat16)       # NHWC bf16 operands

    # conv1 (tconv 3x3 s=2, phase-packed) + upsample 1x1 projection + fused BN partial sums
    y1, u, st1 = tconv_upsample(x, w1pack, Co)
    st1 = jnp.sum(st1, axis=0)                                 # (2, 5*Co)
    s1 = st1[0, :4 * Co].reshape(4, Co).sum(axis=0)
    q1 = st1[1, :4 * Co].reshape(4, Co).sum(axis=0)
    sc1, sh1 = _bn_scale_shift(s1, q1, n_bn)
    scu, shu = _bn_scale_shift(st1[0, 4 * Co:], st1[1, 4 * Co:], n_bn)  # zeros included in count

    # BN1 + ReLU + conv2 (3x3 s=1 p=1 in phase space) + fused BN2 partial sums
    y2, st2 = bn_relu_conv2(y1,
                            jnp.tile(sc1, 4).reshape(1, 4 * Co),
                            jnp.tile(sh1, 4).reshape(1, 4 * Co),
                            w2cat, Co)
    st2 = jnp.sum(st2, axis=0)
    s2 = st2[0].reshape(4, Co).sum(axis=0)
    q2 = st2[1].reshape(4, Co).sum(axis=0)
    sc2, sh2 = _bn_scale_shift(s2, q2, n_bn)

    # epilogue: relu(bn2(conv2) + bn_up(upsample(x))) on the phase-packed layout
    out_pp = residual_bn_relu(
        y2.reshape(B * H * W, 4 * Co), u.reshape(B * H * W, Co),
        jnp.tile(sc2, 4).reshape(1, 4 * Co),
        jnp.tile(sh2 + shu, 4).reshape(1, 4 * Co),
        scu.reshape(1, Co), Co)

    # phase de-interleave folded into the single (mandatory) layout transpose back to NCHW
    out_pp = out_pp.reshape(B, H, W, 2, 2, Co)
    return out_pp.transpose(0, 5, 1, 3, 2, 4).reshape(B, Co, 2 * H, 2 * W)


def init_params(key, inplanes, planes):
    k1, k2, k3 = jax.random.split(key, 3)

    def uni(k, shape, fan_in):
        b = 1.0 / (fan_in ** 0.5)
        return jax.random.uniform(k, shape, jnp.float32, -b, b)

    # PyTorch layouts: ConvTranspose2d (I, O, kh, kw), Conv2d (O, I, kh, kw); all bias-free.
    # TODO(synk): the `upsample` module is injected in PyTorch; we assume the standard
    #             ConvTranspose1x1(stride=2, output_padding=1) + BN decoder projection.
    return {'w1': uni(k1, (inplanes, planes, 3, 3), inplanes * 9),
            'w2': uni(k2, (planes, planes, 3, 3), planes * 9),
            'wup': uni(k3, (inplanes, planes, 1, 1), inplanes)}


def prepare_params(p):
    """Pack weights once into the wide-matmul forms used by the kernels."""
    w1, w2, wup = p['w1'], p['w2'], p['wup']
    Cin, Co = w1.shape[0], w1.shape[1]

    # ---- conv1: sub-pixel phases of ConvTranspose3x3(s=2) + 1x1 upsample proj, one matmul.
    # rows = [x(i,j) | x(i,j+1) | x(i+1,j) | x(i+1,j+1)]; cols = [p00 | p01 | p10 | p11 | u]
    w1t = jnp.transpose(w1, (2, 3, 0, 1))                     # (ky, kx, Cin, Co)
    W1 = jnp.zeros((4 * Cin, 5 * Co), jnp.float32)
    placements = [(0, 0, 1, 1),                                # p00 = x00 @ w[1,1]
                  (1, 1, 1, 0), (0, 1, 1, 2),                  # p01 = x01@w[1,0] + x00@w[1,2]
                  (2, 2, 0, 1), (0, 2, 2, 1),                  # p10 = x10@w[0,1] + x00@w[2,1]
                  (3, 3, 0, 0), (2, 3, 0, 2),                  # p11 = x11@w[0,0] + x10@w[0,2]
                  (1, 3, 2, 0), (0, 3, 2, 2)]                  #     + x01@w[2,0] + x00@w[2,2]
    for rb, cb, ky, kx in placements:
        W1 = W1.at[rb * Cin:(rb + 1) * Cin, cb * Co:(cb + 1) * Co].set(w1t[ky, kx])
    W1 = W1.at[0:Cin, 4 * Co:5 * Co].set(wup[:, :, 0, 0])      # u = x00 @ wup

    # ---- conv2: 3x3 s=1 p=1 on the 2Hx2W image == 3x3 conv on the phase-packed (H,W,4*Co)
    # image with this (3,3,4*Co,4*Co) weight; flattened taps -> (9*4*Co, 4*Co) for one matmul.
    W2 = jnp.zeros((3, 3, 4 * Co, 4 * Co), jnp.float32)
    for da in range(3):
        for db in range(3):
            for piy in range(2):
                for pix in range(2):
                    for qy in range(2):
                        for qx in range(2):
                            dy = 2 * (da - 1) + piy - qy + 1
                            dx = 2 * (db - 1) + pix - qx + 1
                            if 0 <= dy < 3 and 0 <= dx < 3:
                                pi, q = 2 * piy + pix, 2 * qy + qx
                                W2 = W2.at[da, db,
                                           pi * Co:(pi + 1) * Co,
                                           q * Co:(q + 1) * Co].set(
                                               jnp.transpose(w2[:, :, dy, dx]))
    return {'w1pack': W1.astype(jnp.bfloat16),
            'w2cat': W2.reshape(9 * 4 * Co, 4 * Co).astype(jnp.bfloat16)}


if __name__ == "__main__":
    key = jax.random.PRNGKey(0)
    kp, kx = jax.random.split(key)
    B, inplanes, planes, H, W = 2, 64, 32, 16, 16
    params = prepare_params(init_params(kp, inplanes, planes))
    x = jax.random.normal(kx, (B, inplanes, H, W), jnp.float32)     # NCHW input
    y = transpose_basic_block_forward(x, params)
    y = jax.block_until_ready(y)
    assert y.shape == (B, planes, 2 * H, 2 * W), y.shape
    assert bool(jnp.all(jnp.isfinite(y)))
    print("KERNEL_OK")
</pallas_src>

<mosaic_0001>
module attributes {stable_mosaic.version = 11 : i64} {
  func.func @_tconv_up_kernel(%arg0: i32, %arg1: memref<1x16x16x64xbf16, #tpu.memory_space<vmem>>, %arg2: memref<256x160xbf16, #tpu.memory_space<vmem>>, %arg3: memref<1x16x16x128xbf16, #tpu.memory_space<vmem>>, %arg4: memref<1x16x16x32xbf16, #tpu.memory_space<vmem>>, %arg5: memref<1x2x160xf32, #tpu.memory_space<vmem>>) attributes {dimension_semantics = [#tpu.dimension_semantics<parallel>], iteration_bounds = array<i64: 2>, scalar_prefetch = 0 : i64, scratch_operands = 0 : i64, tpu.core_type = #tpu.core_type<tc>, window_params = [{transform_indices = @transform_0, window_bounds = array<i64: 1, 16, 16, 64>}, {pipeline_mode = #tpu.pipeline_mode<synchronous>, transform_indices = @transform_1, window_bounds = array<i64: 256, 160>}, {transform_indices = @transform_2, window_bounds = array<i64: 1, 16, 16, 128>}, {transform_indices = @transform_3, window_bounds = array<i64: 1, 16, 16, 32>}, {transform_indices = @transform_4, window_bounds = array<i64: 1, 2, 160>}]} {
    %c0 = arith.constant 0 : index
    %c0_0 = arith.constant 0 : index
    %c0_1 = arith.constant 0 : index
    %c0_2 = arith.constant 0 : index
    %0 = vector.load %arg1[%c0, %c0_0, %c0_1, %c0_2] : memref<1x16x16x64xbf16, #tpu.memory_space<vmem>>, vector<1x16x16x64xbf16>
    %1 = vector.shape_cast %0 : vector<1x16x16x64xbf16> to vector<16x16x64xbf16>
    %cst = arith.constant 0.000000e+00 : bf16
    %2 = vector.broadcast %cst : bf16 to vector<16x1x64xbf16>
    %cst_3 = arith.constant 0.000000e+00 : bf16
    %3 = vector.broadcast %cst_3 : bf16 to vector<1x17x64xbf16>
    %4 = tpu.concatenate %1, %2 in 1 : vector<16x16x64xbf16>, vector<16x1x64xbf16> -> vector<16x17x64xbf16>
    %5 = tpu.concatenate %4, %3 in 0 : vector<16x17x64xbf16>, vector<1x17x64xbf16> -> vector<17x17x64xbf16>
    %6 = vector.extract_strided_slice %5 {offsets = [0, 0, 0], sizes = [16, 16, 64], strides = [1, 1, 1]} : vector<17x17x64xbf16> to vector<16x16x64xbf16>
    %7 = vector.shape_cast %6 : vector<16x16x64xbf16> to vector<256x64xbf16>
    %8 = vector.extract_strided_slice %5 {offsets = [0, 1, 0], sizes = [16, 16, 64], strides = [1, 1, 1]} : vector<17x17x64xbf16> to vector<16x16x64xbf16>
    %9 = vector.shape_cast %8 : vector<16x16x64xbf16> to vector<256x64xbf16>
    %10 = vector.extract_strided_slice %5 {offsets = [1, 0, 0], sizes = [16, 16, 64], strides = [1, 1, 1]} : vector<17x17x64xbf16> to vector<16x16x64xbf16>
    %11 = vector.shape_cast %10 : vector<16x16x64xbf16> to vector<256x64xbf16>
    %12 = vector.extract_strided_slice %5 {offsets = [1, 1, 0], sizes = [16, 16, 64], strides = [1, 1, 1]} : vector<17x17x64xbf16> to vector<16x16x64xbf16>
    %13 = vector.shape_cast %12 : vector<16x16x64xbf16> to vector<256x64xbf16>
    %14 = tpu.concatenate %7, %9, %11, %13 in 1 : vector<256x64xbf16>, vector<256x64xbf16>, vector<256x64xbf16>, vector<256x64xbf16> -> vector<256x256xbf16>
    %c0_4 = arith.constant 0 : index
    %c0_5 = arith.constant 0 : index
    %15 = vector.load %arg2[%c0_4, %c0_5] : memref<256x160xbf16, #tpu.memory_space<vmem>>, vector<256x160xbf16>
    %cst_6 = arith.constant dense<0.000000e+00> : vector<256x160xf32>
    %16 = tpu.matmul %14, %15, %cst_6 {dimension_numbers = #tpu.dot_dimension_numbers<[1], [0], [0], [1], [0, 0, 1, 1], [], []>} : vector<256x256xbf16>, vector<256x160xbf16>, vector<256x160xf32> -> vector<256x160xf32>
    %17 = vector.extract_strided_slice %16 {offsets = [0, 0], sizes = [256, 128], strides = [1, 1]} : vector<256x160xf32> to vector<256x128xf32>
    %18 = vector.shape_cast %17 : vector<256x128xf32> to vector<16x16x128xf32>
    %19 = arith.truncf %18 : vector<16x16x128xf32> to vector<16x16x128xbf16>
    %c0_7 = arith.constant 0 : index
    %c0_8 = arith.constant 0 : index
    %c0_9 = arith.constant 0 : index
    %c0_10 = arith.constant 0 : index
    %20 = vector.load %arg3[%c0_7, %c0_8, %c0_9, %c0_10] : memref<1x16x16x128xbf16, #tpu.memory_space<vmem>>, vector<1x16x16x128xbf16>
    %21 = vector.shape_cast %20 : vector<1x16x16x128xbf16> to vector<16x16x128xbf16>
    %22 = vector.shape_cast %19 : vector<16x16x128xbf16> to vector<1x16x16x128xbf16>
    tpu.vector_store %arg3[%c0_7, %c0_8, %c0_9, %c0_10], %22 {strides = array<i32>} : memref<1x16x16x128xbf16, #tpu.memory_space<vmem>>, vector<1x16x16x128xbf16>,
    %23 = vector.extract_strided_slice %16 {offsets = [0, 128], sizes = [256, 32], strides = [1, 1]} : vector<256x160xf32> to vector<256x32xf32>
    %24 = vector.shape_cast %23 : vector<256x32xf32> to vector<16x16x32xf32>
    %25 = arith.truncf %24 : vector<16x16x32xf32> to vector<16x16x32xbf16>
    %c0_11 = arith.constant 0 : index
    %c0_12 = arith.constant 0 : index
    %c0_13 = arith.constant 0 : index
    %c0_14 = arith.constant 0 : index
    %26 = vector.load %arg4[%c0_11, %c0_12, %c0_13, %c0_14] : memref<1x16x16x32xbf16, #tpu.memory_space<vmem>>, vector<1x16x16x32xbf16>
    %27 = vector.shape_cast %26 : vector<1x16x16x32xbf16> to vector<16x16x32xbf16>
    %28 = vector.shape_cast %25 : vector<16x16x32xbf16> to vector<1x16x16x32xbf16>
    tpu.vector_store %arg4[%c0_11, %c0_12, %c0_13, %c0_14], %28 {strides = array<i32>} : memref<1x16x16x32xbf16, #tpu.memory_space<vmem>>, vector<1x16x16x32xbf16>,
    %cst_15 = arith.constant dense<0.000000e+00> : vector<160xf32>
    %29 = vector.multi_reduction <add>, %16, %cst_15 [0] : vector<256x160xf32> to vector<160xf32>
    %30 = vector.shape_cast %29 : vector<160xf32> to vector<1x160xf32>
    %31 = arith.mulf %16, %16 : vector<256x160xf32>
    %cst_16 = arith.constant dense<0.000000e+00> : vector<160xf32>
    %32 = vector.multi_reduction <add>, %31, %cst_16 [0] : vector<256x160xf32> to vector<160xf32>
    %33 = vector.shape_cast %32 : vector<160xf32> to vector<1x160xf32>
    %34 = tpu.concatenate %30, %33 in 0 : vector<1x160xf32>, vector<1x160xf32> -> vector<2x160xf32>
    %c0_17 = arith.constant 0 : index
    %c0_18 = arith.constant 0 : index
    %c0_19 = arith.constant 0 : index
    %35 = vector.load %arg5[%c0_17, %c0_18, %c0_19] : memref<1x2x160xf32, #tpu.memory_space<vmem>>, vector<1x2x160xf32>
    %36 = vector.shape_cast %35 : vector<1x2x160xf32> to vector<2x160xf32>
    %37 = vector.shape_cast %34 : vector<2x160xf32> to vector<1x2x160xf32>
    tpu.vector_store %arg5[%c0_17, %c0_18, %c0_19], %37 {strides = array<i32>} : memref<1x2x160xf32, #tpu.memory_space<vmem>>, vector<1x2x160xf32>,
    return
  }
  func.func @transform_0(%arg0: i32) -> (i32, i32, i32, i32) {
    %c0_i32 = arith.constant 0 : i32
    %c0_i32_0 = arith.constant 0 : i32
    %c0_i32_1 = arith.constant 0 : i32
    %c0_i32_2 = arith.constant 0 : i32
    return %arg0, %c0_i32, %c0_i32_0, %c0_i32_1 : i32, i32, i32, i32
  }
  func.func @transform_1(%arg0: i32) -> (i32, i32) {
    %c0_i32 = arith.constant 0 : i32
    %c0_i32_0 = arith.constant 0 : i32
    %c0_i32_1 = arith.constant 0 : i32
    return %c0_i32, %c0_i32_0 : i32, i32
  }
  func.func @transform_2(%arg0: i32) -> (i32, i32, i32, i32) {
    %c0_i32 = arith.constant 0 : i32
    %c0_i32_0 = arith.constant 0 : i32
    %c0_i32_1 = arith.constant 0 : i32
    %c0_i32_2 = arith.constant 0 : i32
    return %arg0, %c0_i32, %c0_i32_0, %c0_i32_1 : i32, i32, i32, i32
  }
  func.func @transform_3(%arg0: i32) -> (i32, i32, i32, i32) {
    %c0_i32 = arith.constant 0 : i32
    %c0_i32_0 = arith.constant 0 : i32
    %c0_i32_1 = arith.constant 0 : i32
    %c0_i32_2 = arith.constant 0 : i32
    return %arg0, %c0_i32, %c0_i32_0, %c0_i32_1 : i32, i32, i32, i32
  }
  func.func @transform_4(%arg0: i32) -> (i32, i32, i32) {
    %c0_i32 = arith.constant 0 : i32
    %c0_i32_0 = arith.constant 0 : i32
    %c0_i32_1 = arith.constant 0 : i32
    return %arg0, %c0_i32, %c0_i32_0 : i32, i32, i32
  }
}

module attributes {stable_mosaic.version = 11 : i64} {
  func.func @_epilogue_kernel(%arg0: i32, %arg1: memref<256x128xbf16, #tpu.memory_space<vmem>>, %arg2: memref<256x32xbf16, #tpu.memory_space<vmem>>, %arg3: memref<1x128xf32, #tpu.memory_space<vmem>>, %arg4: memref<1x128xf32, #tpu.memory_space<vmem>>, %arg5: memref<1x32xf32, #tpu.memory_space<vmem>>, %arg6: memref<256x128xf32, #tpu.memory_space<vmem>>) attributes {dimension_semantics = [#tpu.dimension_semantics<parallel>], iteration_bounds = array<i64: 2>, scalar_prefetch = 0 : i64, scratch_operands = 0 : i64, tpu.core_type = #tpu.core_type<tc>, window_params = [{transform_indices = @transform_0, window_bounds = array<i64: 256, 128>}, {transform_indices = @transform_1, window_bounds = array<i64: 256, 32>}, {pipeline_mode = #tpu.pipeline_mode<synchronous>, transform_indices = @transform_2, window_bounds = array<i64: 1, 128>}, {pipeline_mode = #tpu.pipeline_mode<synchronous>, transform_indices = @transform_3, window_bounds = array<i64: 1, 128>}, {pipeline_mode = #tpu.pipeline_mode<synchronous>, transform_indices = @transform_4, window_bounds = array<i64: 1, 32>}, {transform_indices = @transform_5, window_bounds = array<i64: 256, 128>}]} {
    %c0 = arith.constant 0 : index
    %c0_0 = arith.constant 0 : index
    %0 = vector.load %arg1[%c0, %c0_0] : memref<256x128xbf16, #tpu.memory_space<vmem>>, vector<256x128xbf16>
    %1 = arith.extf %0 : vector<256x128xbf16> to vector<256x128xf32>
    %c0_1 = arith.constant 0 : index
    %c0_2 = arith.constant 0 : index
    %2 = vector.load %arg3[%c0_1, %c0_2] : memref<1x128xf32, #tpu.memory_space<vmem>>, vector<1x128xf32>
    %3 = vector.broadcast %2 : vector<1x128xf32> to vector<256x128xf32>
    %4 = arith.mulf %1, %3 : vector<256x128xf32>
    %c0_3 = arith.constant 0 : index
    %c0_4 = arith.constant 0 : index
    %5 = vector.load %arg4[%c0_3, %c0_4] : memref<1x128xf32, #tpu.memory_space<vmem>>, vector<1x128xf32>
    %6 = vector.broadcast %5 : vector<1x128xf32> to vector<256x128xf32>
    %7 = arith.addf %4, %6 : vector<256x128xf32>
    %c0_5 = arith.constant 0 : index
    %c0_6 = arith.constant 0 : index
    %8 = vector.load %arg2[%c0_5, %c0_6] : memref<256x32xbf16, #tpu.memory_space<vmem>>, vector<256x32xbf16>
    %9 = arith.extf %8 : vector<256x32xbf16> to vector<256x32xf32>
    %c0_7 = arith.constant 0 : index
    %c0_8 = arith.constant 0 : index
    %10 = vector.load %arg5[%c0_7, %c0_8] : memref<1x32xf32, #tpu.memory_space<vmem>>, vector<1x32xf32>
    %11 = vector.broadcast %10 : vector<1x32xf32> to vector<256x32xf32>
    %12 = arith.mulf %9, %11 : vector<256x32xf32>
    %cst = arith.constant 0.000000e+00 : f32
    %13 = vector.broadcast %cst : f32 to vector<256x96xf32>
    %14 = tpu.concatenate %12, %13 in 1 : vector<256x32xf32>, vector<256x96xf32> -> vector<256x128xf32>
    %15 = arith.addf %7, %14 : vector<256x128xf32>
    %cst_9 = arith.constant 0.000000e+00 : f32
    %16 = vector.broadcast %cst_9 : f32 to vector<256x128xf32>
    %17 = arith.maximumf %15, %16 : vector<256x128xf32>
    %c0_10 = arith.constant 0 : index
    %c0_11 = arith.constant 0 : index
    %18 = vector.load %arg6[%c0_10, %c0_11] : memref<256x128xf32, #tpu.memory_space<vmem>>, vector<256x128xf32>
    tpu.vector_store %arg6[%c0_10, %c0_11], %17 {strides = array<i32>} : memref<256x128xf32, #tpu.memory_space<vmem>>, vector<256x128xf32>,
    return
  }
  func.func @transform_0(%arg0: i32) -> (i32, i32) {
    %c0_i32 = arith.constant 0 : i32
    %c0_i32_0 = arith.constant 0 : i32
    return %arg0, %c0_i32 : i32, i32
  }
  func.func @transform_1(%arg0: i32) -> (i32, i32) {
    %c0_i32 = arith.constant 0 : i32
    %c0_i32_0 = arith.constant 0 : i32
    return %arg0, %c0_i32 : i32, i32
  }
  func.func @transform_2(%arg0: i32) -> (i32, i32) {
    %c0_i32 = arith.constant 0 : i32
    %c0_i32_0 = arith.constant 0 : i32
    %c0_i32_1 = arith.constant 0 : i32
    return %c0_i32, %c0_i32_0 : i32, i32
  }
  func.func @transform_3(%arg0: i32) -> (i32, i32) {
    %c0_i32 = arith.constant 0 : i32
    %c0_i32_0 = arith.constant 0 : i32
    %c0_i32_1 = arith.constant 0 : i32
    return %c0_i32, %c0_i32_0 : i32, i32
  }
  func.func @transform_4(%arg0: i32) -> (i32, i32) {
    %c0_i32 = arith.constant 0 : i32
    %c0_i32_0 = arith.constant 0 : i32
    %c0_i32_1 = arith.constant 0 : i32
    return %c0_i32, %c0_i32_0 : i32, i32
  }
  func.func @transform_5(%arg0: i32) -> (i32, i32) {
    %c0_i32 = arith.constant 0 : i32
    %c0_i32_0 = arith.constant 0 : i32
    return %arg0, %c0_i32 : i32, i32
  }
}

module attributes {stable_mosaic.version = 11 : i64} {
  func.func @_bn_relu_conv2_kernel(%arg0: i32, %arg1: i32, %arg2: memref<1x16x16x128xbf16, #tpu.memory_space<vmem>>, %arg3: memref<1x128xf32, #tpu.memory_space<vmem>>, %arg4: memref<1x128xf32, #tpu.memory_space<vmem>>, %arg5: memref<1152x128xbf16, #tpu.memory_space<vmem>>, %arg6: memref<1x8x16x128xbf16, #tpu.memory_space<vmem>>, %arg7: memref<1x2x128xf32, #tpu.memory_space<vmem>>, %arg8: memref<18x18x128xbf16, #tpu.memory_space<vmem>>) attributes {dimension_semantics = [#tpu.dimension_semantics<parallel>, #tpu.dimension_semantics<arbitrary>], iteration_bounds = array<i64: 2, 2>, scalar_prefetch = 0 : i64, scratch_operands = 1 : i64, tpu.core_type = #tpu.core_type<tc>, window_params = [{transform_indices = @transform_0, window_bounds = array<i64: 1, 16, 16, 128>}, {pipeline_mode = #tpu.pipeline_mode<synchronous>, transform_indices = @transform_1, window_bounds = array<i64: 1, 128>}, {pipeline_mode = #tpu.pipeline_mode<synchronous>, transform_indices = @transform_2, window_bounds = array<i64: 1, 128>}, {pipeline_mode = #tpu.pipeline_mode<synchronous>, transform_indices = @transform_3, window_bounds = array<i64: 1152, 128>}, {transform_indices = @transform_4, window_bounds = array<i64: 1, 8, 16, 128>}, {transform_indices = @transform_5, window_bounds = array<i64: 1, 2, 128>}]} {
    %c0_i32 = arith.constant 0 : i32
    %0 = arith.cmpi eq, %arg1, %c0_i32 : i32
    %1 = arith.extui %0 : i1 to i32
    %c0_i32_0 = arith.constant 0 : i32
    %2 = arith.cmpi ne, %1, %c0_i32_0 : i32
    scf.if %2 {
      %c0_16 = arith.constant 0 : index
      %c0_17 = arith.constant 0 : index
      %c0_18 = arith.constant 0 : index
      %c0_19 = arith.constant 0 : index
      %45 = vector.load %arg2[%c0_16, %c0_17, %c0_18, %c0_19] : memref<1x16x16x128xbf16, #tpu.memory_space<vmem>>, vector<1x16x16x128xbf16>
      %46 = vector.shape_cast %45 : vector<1x16x16x128xbf16> to vector<16x16x128xbf16>
      %47 = arith.extf %46 : vector<16x16x128xbf16> to vector<16x16x128xf32>
      %c0_20 = arith.constant 0 : index
      %c0_21 = arith.constant 0 : index
      %48 = vector.load %arg3[%c0_20, %c0_21] : memref<1x128xf32, #tpu.memory_space<vmem>>, vector<1x128xf32>
      %49 = vector.shape_cast %48 : vector<1x128xf32> to vector<1x1x128xf32>
      %50 = vector.broadcast %49 : vector<1x1x128xf32> to vector<16x16x128xf32>
      %51 = arith.mulf %47, %50 : vector<16x16x128xf32>
      %c0_22 = arith.constant 0 : index
      %c0_23 = arith.constant 0 : index
      %52 = vector.load %arg4[%c0_22, %c0_23] : memref<1x128xf32, #tpu.memory_space<vmem>>, vector<1x128xf32>
      %53 = vector.shape_cast %52 : vector<1x128xf32> to vector<1x1x128xf32>
      %54 = vector.broadcast %53 : vector<1x1x128xf32> to vector<16x16x128xf32>
      %55 = arith.addf %51, %54 : vector<16x16x128xf32>
      %cst_24 = arith.constant 0.000000e+00 : f32
      %56 = vector.broadcast %cst_24 : f32 to vector<16x16x128xf32>
      %57 = arith.maximumf %55, %56 : vector<16x16x128xf32>
      %58 = arith.truncf %57 : vector<16x16x128xf32> to vector<16x16x128xbf16>
      %cst_25 = arith.constant 0.000000e+00 : bf16
      %59 = vector.broadcast %cst_25 : bf16 to vector<16x1x128xbf16>
      %60 = tpu.concatenate %59, %58, %59 in 1 : vector<16x1x128xbf16>, vector<16x16x128xbf16>, vector<16x1x128xbf16> -> vector<16x18x128xbf16>
      %cst_26 = arith.constant 0.000000e+00 : bf16
      %61 = vector.broadcast %cst_26 : bf16 to vector<1x18x128xbf16>
      %62 = tpu.concatenate %61, %60, %61 in 0 : vector<1x18x128xbf16>, vector<16x18x128xbf16>, vector<1x18x128xbf16> -> vector<18x18x128xbf16>
      %c0_27 = arith.constant 0 : index
      %c0_28 = arith.constant 0 : index
      %c0_29 = arith.constant 0 : index
      %63 = vector.load %arg8[%c0_27, %c0_28, %c0_29] : memref<18x18x128xbf16, #tpu.memory_space<vmem>>, vector<18x18x128xbf16>
      tpu.vector_store %arg8[%c0_27, %c0_28, %c0_29], %62 {strides = array<i32>} : memref<18x18x128xbf16, #tpu.memory_space<vmem>>, vector<18x18x128xbf16>,
      %cst_30 = arith.constant 0.000000e+00 : f32
      %64 = vector.broadcast %cst_30 : f32 to vector<1x2x128xf32>
      %c0_31 = arith.constant 0 : index
      %c0_32 = arith.constant 0 : index
      %c0_33 = arith.constant 0 : index
      %65 = vector.load %arg7[%c0_31, %c0_32, %c0_33] : memref<1x2x128xf32, #tpu.memory_space<vmem>>, vector<1x2x128xf32>
      tpu.vector_store %arg7[%c0_31, %c0_32, %c0_33], %64 {strides = array<i32>} : memref<1x2x128xf32, #tpu.memory_space<vmem>>, vector<1x2x128xf32>,
    } else {
    }
    %c8_i32 = arith.constant 8 : i32
    %3 = arith.muli %arg1, %c8_i32 : i32
    %4 = tpu.assume_multiple %3, 8 : i32
    %5 = arith.index_cast %4 : i32 to index
    %c0 = arith.constant 0 : index
    %c0_1 = arith.constant 0 : index
    %6 = vector.load %arg8[%5, %c0, %c0_1] : memref<18x18x128xbf16, #tpu.memory_space<vmem>>, vector<10x18x128xbf16>
    %7 = vector.extract_strided_slice %6 {offsets = [0, 0, 0], sizes = [8, 16, 128], strides = [1, 1, 1]} : vector<10x18x128xbf16> to vector<8x16x128xbf16>
    %8 = vector.shape_cast %7 : vector<8x16x128xbf16> to vector<128x128xbf16>
    %9 = vector.extract_strided_slice %6 {offsets = [0, 1, 0], sizes = [8, 16, 128], strides = [1, 1, 1]} : vector<10x18x128xbf16> to vector<8x16x128xbf16>
    %10 = vector.shape_cast %9 : vector<8x16x128xbf16> to vector<128x128xbf16>
    %11 = vector.extract_strided_slice %6 {offsets = [0, 2, 0], sizes = [8, 16, 128], strides = [1, 1, 1]} : vector<10x18x128xbf16> to vector<8x16x128xbf16>
    %12 = vector.shape_cast %11 : vector<8x16x128xbf16> to vector<128x128xbf16>
    %13 = vector.extract_strided_slice %6 {offsets = [1, 0, 0], sizes = [8, 16, 128], strides = [1, 1, 1]} : vector<10x18x128xbf16> to vector<8x16x128xbf16>
    %14 = vector.shape_cast %13 : vector<8x16x128xbf16> to vector<128x128xbf16>
    %15 = vector.extract_strided_slice %6 {offsets = [1, 1, 0], sizes = [8, 16, 128], strides = [1, 1, 1]} : vector<10x18x128xbf16> to vector<8x16x128xbf16>
    %16 = vector.shape_cast %15 : vector<8x16x128xbf16> to vector<128x128xbf16>
    %17 = vector.extract_strided_slice %6 {offsets = [1, 2, 0], sizes = [8, 16, 128], strides = [1, 1, 1]} : vector<10x18x128xbf16> to vector<8x16x128xbf16>
    %18 = vector.shape_cast %17 : vector<8x16x128xbf16> to vector<128x128xbf16>
    %19 = vector.extract_strided_slice %6 {offsets = [2, 0, 0], sizes = [8, 16, 128], strides = [1, 1, 1]} : vector<10x18x128xbf16> to vector<8x16x128xbf16>
    %20 = vector.shape_cast %19 : vector<8x16x128xbf16> to vector<128x128xbf16>
    %21 = vector.extract_strided_slice %6 {offsets = [2, 1, 0], sizes = [8, 16, 128], strides = [1, 1, 1]} : vector<10x18x128xbf16> to vector<8x16x128xbf16>
    %22 = vector.shape_cast %21 : vector<8x16x128xbf16> to vector<128x128xbf16>
    %23 = vector.extract_strided_slice %6 {offsets = [2, 2, 0], sizes = [8, 16, 128], strides = [1, 1, 1]} : vector<10x18x128xbf16> to vector<8x16x128xbf16>
    %24 = vector.shape_cast %23 : vector<8x16x128xbf16> to vector<128x128xbf16>
    %25 = tpu.concatenate %8, %10, %12, %14, %16, %18, %20, %22, %24 in 1 : vector<128x128xbf16>, vector<128x128xbf16>, vector<128x128xbf16>, vector<128x128xbf16>, vector<128x128xbf16>, vector<128x128xbf16>, vector<128x128xbf16>, vector<128x128xbf16>, vector<128x128xbf16> -> vector<128x1152xbf16>
    %c0_2 = arith.constant 0 : index
    %c0_3 = arith.constant 0 : index
    %26 = vector.load %arg5[%c0_2, %c0_3] : memref<1152x128xbf16, #tpu.memory_space<vmem>>, vector<1152x128xbf16>
    %cst = arith.constant dense<0.000000e+00> : vector<128x128xf32>
    %27 = tpu.matmul %25, %26, %cst {dimension_numbers = #tpu.dot_dimension_numbers<[1], [0], [0], [1], [0, 0, 1, 1], [], []>} : vector<128x1152xbf16>, vector<1152x128xbf16>, vector<128x128xf32> -> vector<128x128xf32>
    %28 = vector.shape_cast %27 : vector<128x128xf32> to vector<8x16x128xf32>
    %29 = arith.truncf %28 : vector<8x16x128xf32> to vector<8x16x128xbf16>
    %c0_4 = arith.constant 0 : index
    %c0_5 = arith.constant 0 : index
    %c0_6 = arith.constant 0 : index
    %c0_7 = arith.constant 0 : index
    %30 = vector.load %arg6[%c0_4, %c0_5, %c0_6, %c0_7] : memref<1x8x16x128xbf16, #tpu.memory_space<vmem>>, vector<1x8x16x128xbf16>
    %31 = vector.shape_cast %30 : vector<1x8x16x128xbf16> to vector<8x16x128xbf16>
    %32 = vector.shape_cast %29 : vector<8x16x128xbf16> to vector<1x8x16x128xbf16>
    tpu.vector_store %arg6[%c0_4, %c0_5, %c0_6, %c0_7], %32 {strides = array<i32>} : memref<1x8x16x128xbf16, #tpu.memory_space<vmem>>, vector<1x8x16x128xbf16>,
    %cst_8 = arith.constant dense<0.000000e+00> : vector<128xf32>
    %33 = vector.multi_reduction <add>, %27, %cst_8 [0] : vector<128x128xf32> to vector<128xf32>
    %34 = vector.shape_cast %33 : vector<128xf32> to vector<1x128xf32>
    %35 = arith.mulf %27, %27 : vector<128x128xf32>
    %cst_9 = arith.constant dense<0.000000e+00> : vector<128xf32>
    %36 = vector.multi_reduction <add>, %35, %cst_9 [0] : vector<128x128xf32> to vector<128xf32>
    %37 = vector.shape_cast %36 : vector<128xf32> to vector<1x128xf32>
    %c0_10 = arith.constant 0 : index
    %c0_11 = arith.constant 0 : index
    %c0_12 = arith.constant 0 : index
    %38 = vector.load %arg7[%c0_10, %c0_11, %c0_12] : memref<1x2x128xf32, #tpu.memory_space<vmem>>, vector<1x2x128xf32>
    %39 = vector.shape_cast %38 : vector<1x2x128xf32> to vector<2x128xf32>
    %40 = tpu.concatenate %34, %37 in 0 : vector<1x128xf32>, vector<1x128xf32> -> vector<2x128xf32>
    %41 = arith.addf %39, %40 : vector<2x128xf32>
    %c0_13 = arith.constant 0 : index
    %c0_14 = arith.constant 0 : index
    %c0_15 = arith.constant 0 : index
    %42 = vector.load %arg7[%c0_13, %c0_14, %c0_15] : memref<1x2x128xf32, #tpu.memory_space<vmem>>, vector<1x2x128xf32>
    %43 = vector.shape_cast %42 : vector<1x2x128xf32> to vector<2x128xf32>
    %44 = vector.shape_cast %41 : vector<2x128xf32> to vector<1x2x128xf32>
    tpu.vector_store %arg7[%c0_13, %c0_14, %c0_15], %44 {strides = array<i32>} : memref<1x2x128xf32, #tpu.memory_space<vmem>>, vector<1x2x128xf32>,
    return
  }
  func.func @transform_0(%arg0: i32, %arg1: i32) -> (i32, i32, i32, i32) {
    %c0_i32 = arith.constant 0 : i32
    %c0_i32_0 = arith.constant 0 : i32
    %c0_i32_1 = arith.constant 0 : i32
    %c0_i32_2 = arith.constant 0 : i32
    return %arg0, %c0_i32, %c0_i32_0, %c0_i32_1 : i32, i32, i32, i32
  }
  func.func @transform_1(%arg0: i32, %arg1: i32) -> (i32, i32) {
    %c0_i32 = arith.constant 0 : i32
    %c0_i32_0 = arith.constant 0 : i32
    %c0_i32_1 = arith.constant 0 : i32
    return %c0_i32, %c0_i32_0 : i32, i32
  }
  func.func @transform_2(%arg0: i32, %arg1: i32) -> (i32, i32) {
    %c0_i32 = arith.constant 0 : i32
    %c0_i32_0 = arith.constant 0 : i32
    %c0_i32_1 = arith.constant 0 : i32
    return %c0_i32, %c0_i32_0 : i32, i32
  }
  func.func @transform_3(%arg0: i32, %arg1: i32) -> (i32, i32) {
    %c0_i32 = arith.constant 0 : i32
    %c0_i32_0 = arith.constant 0 : i32
    %c0_i32_1 = arith.constant 0 : i32
    return %c0_i32, %c0_i32_0 : i32, i32
  }
  func.func @transform_4(%arg0: i32, %arg1: i32) -> (i32, i32, i32, i32) {
    %c0_i32 = arith.constant 0 : i32
    %c0_i32_0 = arith.constant 0 : i32
    %c0_i32_1 = arith.constant 0 : i32
    return %arg0, %arg1, %c0_i32, %c0_i32_0 : i32, i32, i32, i32
  }
  func.func @transform_5(%arg0: i32, %arg1: i32) -> (i32, i32, i32) {
    %c0_i32 = arith.constant 0 : i32
    %c0_i32_0 = arith.constant 0 : i32
    %c0_i32_1 = arith.constant 0 : i32
    return %arg0, %c0_i32, %c0_i32_0 : i32, i32, i32
  }
}

</mosaic_0001>

<llo_original>
// kernel: squeeze.6
$region0: #{squeeze.6}
  %s0 = inlined_call_operand.vmem [shape: f32[128], index: 0, kind: input, shape index: {}]
  %s1 = inlined_call_operand.vmem [shape: f32[4,32], index: 1, kind: output, shape index: {}]
  $region1: #{squeeze.6} parent=0
    #allocation0 [shape = 'u8[4096]{0}', space=vmem, size = 0x1000, scoped, tag = 'scoped mem for output reshape']
    #allocation1 [shape = 'u8[4096]{0}', space=vmem, size = 0x1000, scoped, tag = 'scoped mem for input reshape']
    %s3 = sshllo.u32 0, 1
    %v4 = vld [vmem:[%s0] sm:%s3]
    %5 = vst [vmem:[#allocation1] sm:%s3] %v4
    %v6 = vld [vmem:[#allocation1] sm:$0x1]
    %vm7 = vcmask 261120
    %8 = vst.msk [vmem:[#allocation0] sm:$0x1] %vm7, %v6
    %v9 = vld [vmem:[#allocation1] sm:$0x1]
    %10 = vrot.lane.b32.xlu0 %v9, 96
    %v11 = vpop.permute.xlu0 %10
    %vm12 = vcmask 261120
    %s13 = scalar_lea.vmem [#allocation0], 1
    %14 = vst.msk [vmem:[%s13] sm:$0x1] %vm12, %v11
    %v15 = vld [vmem:[#allocation1] sm:$0x1]
    %16 = vrot.lane.b32.xlu0 %v15, 64
    %v17 = vpop.permute.xlu0 %16
    %vm18 = vcmask 261120
    %s19 = scalar_lea.vmem [#allocation0], 2
    %20 = vst.msk [vmem:[%s19] sm:$0x1] %vm18, %v17
    %v21 = vld [vmem:[#allocation1] sm:$0x1]
    %22 = vrot.lane.b32.xlu0 %v21, 32
    %v23 = vpop.permute.xlu0 %22
    %vm24 = vcmask 261120
    %s25 = scalar_lea.vmem [#allocation0], 3
    %26 = vst.msk [vmem:[%s25] sm:$0x1] %vm24, %v23
    %s28 = sshllo.u32 0, 4
    %v30 = vld [vmem:[#allocation0] sm:%s28]
    %s31 = sshllo.u32 0, 4
    %32 = vst [vmem:[%s1] sm:%s31] %v30

// kernel: tile.29
$region0: #{tile.29}
  %s0 = inlined_call_operand.vmem [shape: f32[4,32], index: 0, kind: input, shape index: {}]
  %s1 = inlined_call_operand.vmem [shape: f32[1,128], index: 1, kind: output, shape index: {}]
  $region1: #{tile.29} parent=0
    #allocation0 [shape = 'u8[4096]{0}', space=vmem, size = 0x1000, scoped, tag = 'scoped mem for output reshape']
    #allocation1 [shape = 'u8[4096]{0}', space=vmem, size = 0x1000, scoped, tag = 'scoped mem for input reshape']
    %s3 = sshllo.u32 0, 4
    %v4 = vld [vmem:[%s0] sm:%s3]
    %5 = vst [vmem:[#allocation1] sm:%s3] %v4
    %v6 = vld [vmem:[#allocation1] sm:$0x1]
    %vm7 = vcmask 261120
    %8 = vst.msk [vmem:[#allocation0] sm:$0x1] %vm7, %v6
    %s9 = scalar_lea.vmem [#allocation1], 3
    %v10 = vld [vmem:[%s9] sm:$0x1]
    %11 = vrot.lane.b32.xlu0 %v10, 96
    %v12 = vpop.permute.xlu0 %11
    %vm13 = vcmask 1048320
    %14 = vst.msk [vmem:[#allocation0] sm:$0x1] %vm13, %v12
    %s15 = scalar_lea.vmem [#allocation1], 2
    %v16 = vld [vmem:[%s15] sm:$0x1]
    %17 = vrot.lane.b32.xlu0 %v16, 64
    %v18 = vpop.permute.xlu0 %17
    %vm19 = vcmask 785920
    %20 = vst.msk [vmem:[#allocation0] sm:$0x1] %vm19, %v18
    %s21 = scalar_lea.vmem [#allocation1], 1
    %v22 = vld [vmem:[%s21] sm:$0x1]
    %23 = vrot.lane.b32.xlu0 %v22, 32
    %v24 = vpop.permute.xlu0 %23
    %vm25 = vcmask 523520
    %26 = vst.msk [vmem:[#allocation0] sm:$0x1] %vm25, %v24
    %s28 = sshllo.u32 0, 1
    %v30 = vld [vmem:[#allocation0] sm:%s28]
    %s31 = sshllo.u32 0, 1
    %32 = vst [vmem:[%s1] sm:%s31] %v30

// kernel: tile.28
$region0: #{tile.28}
  #allocation0 [shape = 's32[1]{0}', space=sflag, size = 0x4, scoped, tag = 'scoped memory for tile.28']
  %s0 = inlined_call_operand.vmem [shape: f32[32], index: 0, kind: input, shape index: {}]
  %s1 = inlined_call_operand.vmem [shape: f32[4,32], index: 1, kind: output, shape index: {}]
  // Predicated region
  $region2: #{tile.28} parent=0 // pred_check
    _
  $region3: #{tile.28} parent=0 // pred_check_branch
    %3 = sbr.rel (0) target = $region5
  $region4: #{tile.28} parent=0 // pred_region
    _
  $region5: #{tile.28} parent=0 // pred_fallthru
    _
  %v4 = vld [vmem:[%s0] ss:$0 sm:$0xff]
  %5 = vst [vmem:[%s1] sm:$0xf] %v4

</llo_original>
